<compile_context>
chip_gen: v7x
topology: tpu7x:2x2x1
jax: 0.10.0
libtpu: 0.0.40
codegen_flags: <defaults>
</compile_context>

<pallas_src>
import math
from functools import partial

import numpy as np

import jax
import jax.numpy as jnp
from jax import lax
from jax.experimental import pallas as pl
from jax.experimental.pallas import tpu as pltpu

_MIB = 1 << 20


# ------------------------------- helpers ------------------------------------


def _gelu(x):
    # tanh-approximate GELU (TPU-safe lowering).
    return 0.5 * x * (1.0 + jnp.tanh(0.7978845608028654 * (x + 0.044715 * x * x * x)))


def _pick_seq_tile(s):
    """Largest lane-friendly tile that divides S (falls back to full S)."""
    for t in (512, 256, 128):
        if s % t == 0:
            return t
    return s


def _vmem_limit(block_bytes):
    return int(min(64 * _MIB, max(16 * _MIB, 2 * block_bytes)))


# --------------------------- pass 1: scoring ---------------------------------


def _score_kernel(x_ref, w1_ref, aux_ref, srow_ref, scol_ref):
    """importance_scorer logits for one (batch, seq-chunk) tile.

    x_ref   : (1, TS, D)
    w1_ref  : (D, Dh)        scorer first linear
    aux_ref : (3, Dh)        rows = [b1, w2, [b2, 0, ...]]
    srow_ref: (1, 1, TS)     lane-dense logits
    scol_ref: (1, TS, 1)     sublane-oriented copy (feeds the chunked rank pass)
    """
    x = x_ref[0]                                           # (TS, D) f32
    w1 = w1_ref[...]
    b1 = aux_ref[0:1, :]                                   # (1, Dh)
    w2 = aux_ref[1:2, :]                                   # (1, Dh)
    b2 = aux_ref[2:3, 0:1]                                 # (1, 1)

    # Linear(D, D//2) -> GELU -> Linear(D//2, 1).  The reference's final Sigmoid and
    # per-batch min-max normalisation are strictly monotone and never exported, so
    # ranking on the raw logit is equivalent.  bf16 single-pass MXU (no HIGHEST).
    h = _gelu(jnp.dot(x.astype(jnp.bfloat16), w1.astype(jnp.bfloat16),
                      preferred_element_type=jnp.float32) + b1)        # (TS, Dh)
    logit = jnp.sum(h * w2, axis=-1, keepdims=True) + b2               # (TS, 1)

    scol_ref[0] = logit
    srow_ref[0] = jnp.transpose(logit)                                 # (1, TS)


def _run_score(x, params):
    b, s, d = x.shape
    w1, aux = params["w1"], params["aux"]
    dh = w1.shape[1]
    ts = _pick_seq_tile(s)
    blk_bytes = 2 * (ts * d * 4 + d * dh * 4 + 3 * dh * 4 + 2 * ts * 4)
    return pl.pallas_call(
        _score_kernel,
        out_shape=(jax.ShapeDtypeStruct((b, 1, s), jnp.float32),
                   jax.ShapeDtypeStruct((b, s, 1), jnp.float32)),
        grid=(b, s // ts),
        in_specs=[pl.BlockSpec((1, ts, d), lambda i, c: (i, c, 0)),
                  pl.BlockSpec((d, dh), lambda i, c: (0, 0)),
                  pl.BlockSpec((3, dh), lambda i, c: (0, 0))],
        out_specs=(pl.BlockSpec((1, 1, ts), lambda i, c: (i, 0, c)),
                   pl.BlockSpec((1, ts, 1), lambda i, c: (i, c, 0))),
        compiler_params=pltpu.CompilerParams(
            dimension_semantics=("parallel", "parallel"),
            vmem_limit_bytes=_vmem_limit(blk_bytes)),
    )(x, w1, aux)


# ----------------------- pass 2: top-k index selection -----------------------


def _select_kernel(srow_ref, scol_ref, idx_ref, *, num_keep, chunk):
    """Exact, stable top-k selection for one batch row (indices only).

    srow_ref: (1, 1, S)   lane-dense logits
    scol_ref: (1, S, 1)   sublane copy (pre-transposed in pass 1)
    idx_ref : (1, K, 1)   kept indices, ascending
    """
    s_row = srow_ref[0]                                    # (1, S)
    s_len = s_row.shape[1]
    lane = lax.broadcasted_iota(jnp.int32, (1, s_len), 1)  # token index i on lanes

    # "j outranks i" := s_j > s_i or (s_j == s_i and j < i)  (strict total order).
    # rank[j] = #{i : i outranks j};  keep j iff rank[j] < K.
    # cs[i]   = #{j <= i : keep[j]}   (inclusive kept-token count).
    # Both are accumulated in ONE chunked pass: only a (chunk, S) tile is live,
    # no SxS matrices, no SxS transposes, single orientation.
    cs = jnp.zeros((1, s_len), jnp.int32)
    for c0 in range(0, s_len, chunk):
        s_col = scol_ref[0, c0:c0 + chunk, :]                          # (C, 1)
        j_idx = c0 + lax.broadcasted_iota(jnp.int32, (chunk, 1), 0)    # (C, 1)
        beats = (s_col > s_row) | ((s_col == s_row) & (j_idx < lane))  # (C, S)
        n_beaten = jnp.sum(beats.astype(jnp.int32), axis=1, keepdims=True)  # (C, 1)
        rank_j = (s_len - 1) - n_beaten                                # rank of chunk
        keep_j = (rank_j < num_keep).astype(jnp.int32)                 # (C, 1)
        cs = cs + jnp.sum(jnp.where(j_idx <= lane, keep_j, 0),
                          axis=0, keepdims=True)                       # (1, S)

    # kept_idx[k] = #{i : cs[i] <= k}  == index of the (k+1)-th kept token, so the
    # indices come out sorted ascending (matches torch.sort(topk(...).indices)).
    k_col = lax.broadcasted_iota(jnp.int32, (num_keep, 1), 0)          # (K, 1)
    kidx = jnp.zeros((num_keep, 1), jnp.int32)
    for c0 in range(0, s_len, chunk):
        cs_chunk = cs[:, c0:c0 + chunk]                                # (1, C)
        kidx = kidx + jnp.sum((cs_chunk <= k_col).astype(jnp.int32),
                              axis=1, keepdims=True)                   # (K, 1)
    idx_ref[0] = kidx


def _run_select(srow, scol, num_keep):
    b, _, s = srow.shape
    chunk = _pick_seq_tile(s)
    blk_bytes = 2 * (2 * s * 4 + num_keep * 4) + 4 * chunk * s * 4
    kernel = partial(_select_kernel, num_keep=num_keep, chunk=chunk)
    idx = pl.pallas_call(
        kernel,
        out_shape=jax.ShapeDtypeStruct((b, num_keep, 1), jnp.int32),
        grid=(b,),
        in_specs=[pl.BlockSpec((1, 1, s), lambda i: (i, 0, 0)),
                  pl.BlockSpec((1, s, 1), lambda i: (i, 0, 0))],
        out_specs=pl.BlockSpec((1, num_keep, 1), lambda i: (i, 0, 0)),
        compiler_params=pltpu.CompilerParams(
            dimension_semantics=("parallel",),
            vmem_limit_bytes=_vmem_limit(blk_bytes)),
    )(srow, scol)
    return idx.reshape(b, num_keep)


# ------------------- pass 3: index-driven row gather (exact) -----------------


def _gather_row_kernel(idx_ref, x_ref, o_ref):
    del idx_ref  # indices are consumed by the index_maps (scalar prefetch)
    o_ref[...] = x_ref[...]


def _run_gather(x, kept_idx, num_keep):
    b, s, d = x.shape
    x2 = x.reshape(b * s, 1, d)      # row-major view; keeps block last-two dims clean
    out = pl.pallas_call(
        _gather_row_kernel,
        out_shape=jax.ShapeDtypeStruct((b * num_keep, 1, d), x.dtype),
        grid_spec=pltpu.PrefetchScalarGridSpec(
            num_scalar_prefetch=1,
            grid=(b, num_keep),
            in_specs=[pl.BlockSpec(
                (1, 1, d), lambda bi, ki, idx: (bi * s + idx[bi, ki], 0, 0))],
            out_specs=pl.BlockSpec(
                (1, 1, d), lambda bi, ki, idx: (bi * num_keep + ki, 0, 0)),
        ),
        compiler_params=pltpu.CompilerParams(
            dimension_semantics=("parallel", "arbitrary"),
            vmem_limit_bytes=_vmem_limit(4 * d * 4)),
    )(kept_idx, x2)
    return out.reshape(b, num_keep, d)


# ------------------------------ module forward -------------------------------


def contextual_compressor_forward(x, params, *, compress=True,
                                  target_compression_ratio=4.0,
                                  min_tokens_before_compression=1024,
                                  token_budget=None):
    """ContextualCompressor.forward for adaptive_compression=False + 'prune'."""
    b, s, _ = x.shape
    if (not compress) or (s <= min_tokens_before_compression):
        mapping = jnp.broadcast_to(jnp.arange(s, dtype=jnp.int32)[None, :], (b, s))
        return x, mapping

    if token_budget is not None:
        target_len = min(s, token_budget)
        actual_ratio = s / max(1, target_len)
    else:
        actual_ratio = target_compression_ratio

    # Matches reference exactly: num_keep = max(1, int(seq_len * (1.0 / ratio))).
    num_keep = min(s, max(1, int(s * (1.0 / actual_ratio))))

    srow, scol = _run_score(x, params)
    kept_idx = _run_select(srow, scol, num_keep)
    pruned = _run_gather(x, kept_idx, num_keep)
    return pruned, kept_idx


# ------------------------------- parameters ----------------------------------


def init_params(key, dim):
    dh = dim // 2
    k1, k2, k3, k4 = jax.random.split(key, 4)
    w1 = jax.random.normal(k1, (dim, dh), jnp.float32) / math.sqrt(dim)
    b1 = 0.1 * jax.random.normal(k2, (dh,), jnp.float32)
    w2 = jax.random.normal(k3, (dh,), jnp.float32) / math.sqrt(dh)
    b2 = 0.1 * jax.random.normal(k4, (1,), jnp.float32)
    row2 = jnp.concatenate([b2, jnp.zeros((dh - 1,), jnp.float32)])
    aux = jnp.stack([b1, w2, row2], axis=0)                 # (3, dh) packed slab
    return {"w1": w1, "aux": aux}


def _reference_logits(x, params):
    """Pure-JAX rank-equivalent importance logits (bf16 matmul like the kernel)."""
    w1, aux = params["w1"], params["aux"]
    b1, w2, b2 = aux[0], aux[1], aux[2, 0]
    h = _gelu(jnp.dot(x.astype(jnp.bfloat16), w1.astype(jnp.bfloat16),
                      preferred_element_type=jnp.float32) + b1)
    return jnp.sum(h * w2, axis=-1) + b2                    # (B, S)


# ----------------------------------- main -------------------------------------


if __name__ == "__main__":
    key = jax.random.PRNGKey(0)
    pkey, xkey = jax.random.split(key)

    B, S, D = 2, 64, 32
    RATIO = 4.0
    MIN_TOKENS = 16          # constructor arg; small so the compression path runs

    params = init_params(pkey, D)
    x = jax.random.normal(xkey, (B, S, D), jnp.float32)

    pruned, kept_idx = contextual_compressor_forward(
        x, params, compress=True,
        target_compression_ratio=RATIO,
        min_tokens_before_compression=MIN_TOKENS)
    pruned, kept_idx = jax.block_until_ready((pruned, kept_idx))

    K = max(1, int(S * (1.0 / RATIO)))
    assert pruned.shape == (B, K, D), pruned.shape
    assert kept_idx.shape == (B, K), kept_idx.shape

    idx_np = np.asarray(kept_idx)
    x_np = np.asarray(x)
    pruned_np = np.asarray(pruned)

    # kept indices in range and strictly increasing (original order preserved)
    assert np.all((idx_np >= 0) & (idx_np < S))
    assert np.all(np.diff(idx_np, axis=1) > 0)

    # gather is a pure row copy now -> bit-exact reproduction of selected tokens
    gathered = np.take_along_axis(x_np, idx_np[..., None], axis=1)
    assert np.array_equal(pruned_np, gathered)

    # kernel scores match the pure-JAX reference, and both orientations agree
    srow, scol = jax.block_until_ready(_run_score(x, params))
    ref = np.asarray(_reference_logits(x, params))                      # [B, S]
    assert np.allclose(np.asarray(srow).reshape(B, S), ref, atol=2e-2, rtol=2e-2)
    assert np.array_equal(np.asarray(scol).reshape(B, S),
                          np.asarray(srow).reshape(B, S))

    # top-k property of the selection vs. the importance reference
    for bb in range(B):
        m = np.zeros(S, dtype=bool)
        m[idx_np[bb]] = True
        assert ref[bb][m].min() >= ref[bb][~m].max() - 5e-3

    # identity path (compress=False / short sequence)
    y_id, map_id = contextual_compressor_forward(x, params, compress=False)
    assert y_id.shape == x.shape and map_id.shape == (B, S)
    assert np.array_equal(np.asarray(map_id), np.tile(np.arange(S), (B, 1)))

    print("KERNEL_OK")
</pallas_src>

<mosaic_0001>
module attributes {stable_mosaic.version = 11 : i64} {
  func.func @_score_kernel(%arg0: i32, %arg1: i32, %arg2: memref<1x64x32xf32, #tpu.memory_space<vmem>>, %arg3: memref<32x16xf32, #tpu.memory_space<vmem>>, %arg4: memref<3x16xf32, #tpu.memory_space<vmem>>, %arg5: memref<1x1x64xf32, #tpu.memory_space<vmem>>, %arg6: memref<1x64x1xf32, #tpu.memory_space<vmem>>) attributes {dimension_semantics = [#tpu.dimension_semantics<parallel>, #tpu.dimension_semantics<parallel>], iteration_bounds = array<i64: 2, 1>, scalar_prefetch = 0 : i64, scratch_operands = 0 : i64, tpu.core_type = #tpu.core_type<tc>, window_params = [{transform_indices = @transform_0, window_bounds = array<i64: 1, 64, 32>}, {pipeline_mode = #tpu.pipeline_mode<synchronous>, transform_indices = @transform_1, window_bounds = array<i64: 32, 16>}, {pipeline_mode = #tpu.pipeline_mode<synchronous>, transform_indices = @transform_2, window_bounds = array<i64: 3, 16>}, {transform_indices = @transform_3, window_bounds = array<i64: 1, 1, 64>}, {transform_indices = @transform_4, window_bounds = array<i64: 1, 64, 1>}]} {
    %c0 = arith.constant 0 : index
    %c0_0 = arith.constant 0 : index
    %c0_1 = arith.constant 0 : index
    %0 = vector.load %arg2[%c0, %c0_0, %c0_1] : memref<1x64x32xf32, #tpu.memory_space<vmem>>, vector<1x64x32xf32>
    %1 = vector.shape_cast %0 : vector<1x64x32xf32> to vector<64x32xf32>
    %c0_2 = arith.constant 0 : index
    %c0_3 = arith.constant 0 : index
    %2 = vector.load %arg3[%c0_2, %c0_3] : memref<32x16xf32, #tpu.memory_space<vmem>>, vector<32x16xf32>
    %c0_4 = arith.constant 0 : index
    %c0_5 = arith.constant 0 : index
    %3 = vector.load %arg4[%c0_4, %c0_5] : memref<3x16xf32, #tpu.memory_space<vmem>>, vector<1x16xf32>
    %c1 = arith.constant 1 : index
    %c0_6 = arith.constant 0 : index
    %4 = vector.load %arg4[%c1, %c0_6] : memref<3x16xf32, #tpu.memory_space<vmem>>, vector<1x16xf32>
    %c2 = arith.constant 2 : index
    %c0_7 = arith.constant 0 : index
    %5 = vector.load %arg4[%c2, %c0_7] : memref<3x16xf32, #tpu.memory_space<vmem>>, vector<1x1xf32>
    %6 = arith.truncf %1 : vector<64x32xf32> to vector<64x32xbf16>
    %7 = arith.truncf %2 : vector<32x16xf32> to vector<32x16xbf16>
    %cst = arith.constant dense<0.000000e+00> : vector<64x16xf32>
    %8 = tpu.matmul %6, %7, %cst {dimension_numbers = #tpu.dot_dimension_numbers<[1], [0], [0], [1], [0, 0, 1, 1], [], []>} : vector<64x32xbf16>, vector<32x16xbf16>, vector<64x16xf32> -> vector<64x16xf32>
    %9 = vector.broadcast %3 : vector<1x16xf32> to vector<64x16xf32>
    %10 = arith.addf %8, %9 : vector<64x16xf32>
    %cst_8 = arith.constant 5.000000e-01 : f32
    %11 = vector.broadcast %cst_8 : f32 to vector<64x16xf32>
    %12 = arith.mulf %11, %10 : vector<64x16xf32>
    %cst_9 = arith.constant 4.471500e-02 : f32
    %13 = vector.broadcast %cst_9 : f32 to vector<64x16xf32>
    %14 = arith.mulf %13, %10 : vector<64x16xf32>
    %15 = arith.mulf %14, %10 : vector<64x16xf32>
    %16 = arith.mulf %15, %10 : vector<64x16xf32>
    %17 = arith.addf %10, %16 : vector<64x16xf32>
    %cst_10 = arith.constant 0.797884583 : f32
    %18 = vector.broadcast %cst_10 : f32 to vector<64x16xf32>
    %19 = arith.mulf %18, %17 : vector<64x16xf32>
    %20 = math.tanh %19 : vector<64x16xf32>
    %cst_11 = arith.constant 1.000000e+00 : f32
    %21 = vector.broadcast %cst_11 : f32 to vector<64x16xf32>
    %22 = arith.addf %21, %20 : vector<64x16xf32>
    %23 = arith.mulf %12, %22 : vector<64x16xf32>
    %24 = vector.broadcast %4 : vector<1x16xf32> to vector<64x16xf32>
    %25 = arith.mulf %23, %24 : vector<64x16xf32>
    %cst_12 = arith.constant dense<0.000000e+00> : vector<64xf32>
    %26 = vector.multi_reduction <add>, %25, %cst_12 [1] : vector<64x16xf32> to vector<64xf32>
    %27 = vector.shape_cast %26 : vector<64xf32> to vector<64x1xf32>
    %28 = vector.broadcast %5 : vector<1x1xf32> to vector<64x1xf32>
    %29 = arith.addf %27, %28 : vector<64x1xf32>
    %c0_13 = arith.constant 0 : index
    %c0_14 = arith.constant 0 : index
    %c0_15 = arith.constant 0 : index
    %30 = vector.load %arg6[%c0_13, %c0_14, %c0_15] : memref<1x64x1xf32, #tpu.memory_space<vmem>>, vector<1x64x1xf32>
    %31 = vector.shape_cast %30 : vector<1x64x1xf32> to vector<64x1xf32>
    %32 = vector.shape_cast %29 : vector<64x1xf32> to vector<1x64x1xf32>
    tpu.vector_store %arg6[%c0_13, %c0_14, %c0_15], %32 {strides = array<i32>} : memref<1x64x1xf32, #tpu.memory_space<vmem>>, vector<1x64x1xf32>,
    %33 = tpu.transpose %29, [1, 0] : vector<64x1xf32> -> vector<1x64xf32>
    %c0_16 = arith.constant 0 : index
    %c0_17 = arith.constant 0 : index
    %c0_18 = arith.constant 0 : index
    %34 = vector.load %arg5[%c0_16, %c0_17, %c0_18] : memref<1x1x64xf32, #tpu.memory_space<vmem>>, vector<1x1x64xf32>
    %35 = vector.shape_cast %34 : vector<1x1x64xf32> to vector<1x64xf32>
    %36 = vector.shape_cast %33 : vector<1x64xf32> to vector<1x1x64xf32>
    tpu.vector_store %arg5[%c0_16, %c0_17, %c0_18], %36 {strides = array<i32>} : memref<1x1x64xf32, #tpu.memory_space<vmem>>, vector<1x1x64xf32>,
    return
  }
  func.func @transform_0(%arg0: i32, %arg1: i32) -> (i32, i32, i32) {
    %c0_i32 = arith.constant 0 : i32
    %c0_i32_0 = arith.constant 0 : i32
    return %arg0, %arg1, %c0_i32 : i32, i32, i32
  }
  func.func @transform_1(%arg0: i32, %arg1: i32) -> (i32, i32) {
    %c0_i32 = arith.constant 0 : i32
    %c0_i32_0 = arith.constant 0 : i32
    %c0_i32_1 = arith.constant 0 : i32
    return %c0_i32, %c0_i32_0 : i32, i32
  }
  func.func @transform_2(%arg0: i32, %arg1: i32) -> (i32, i32) {
    %c0_i32 = arith.constant 0 : i32
    %c0_i32_0 = arith.constant 0 : i32
    %c0_i32_1 = arith.constant 0 : i32
    return %c0_i32, %c0_i32_0 : i32, i32
  }
  func.func @transform_3(%arg0: i32, %arg1: i32) -> (i32, i32, i32) {
    %c0_i32 = arith.constant 0 : i32
    %c0_i32_0 = arith.constant 0 : i32
    return %arg0, %c0_i32, %arg1 : i32, i32, i32
  }
  func.func @transform_4(%arg0: i32, %arg1: i32) -> (i32, i32, i32) {
    %c0_i32 = arith.constant 0 : i32
    %c0_i32_0 = arith.constant 0 : i32
    return %arg0, %arg1, %c0_i32 : i32, i32, i32
  }
}

</mosaic_0001>

<llo_original>
// kernel: tpu_custom_call.1
$region0: #{tpu_custom_call.1}
  #allocation0 [shape = 'u32[]', space=smem, size = 0x4, offset = 0x4, fixed_abs, tag = 'smem constant byte address 0x4 - core index']
  #allocation1 [shape = 'u32[144,128]{1,0:T(1,128)}', space=vmem, size = 0x12000, scoped, tag = 'internal scratch']
  %s0 = inlined_call_operand.vmem [shape: f32[2,64,32], index: 0, kind: input, shape index: {}]
  %s1 = inlined_call_operand.vmem [shape: f32[32,16], index: 1, kind: input, shape index: {}]
  %s2 = inlined_call_operand.vmem [shape: f32[3,16], index: 2, kind: input, shape index: {}]
  %s3 = inlined_call_operand.hbm [shape: f32[2,1,64], index: 3, kind: output, shape index: {0}]
  %s4 = inlined_call_operand.vmem [shape: f32[2,64,1], index: 4, kind: output, shape index: {1}]
  %5 = xla_tuple %s3, %s4
  %s6 = sld [smem:[#allocation0]]
  $region53: #{tpu_custom_call.1} parent=0
    _
  %s8 = ssub.s32 1, %s6
  %s9 = scalar_select 0, %s8, %s6
  $region1: #{tpu_custom_call.1} parent=0
    #allocation2 [shape = 'u8[1024]{0}', space=vmem, size = 0x400, scoped, tag = 'output window, operand 0']
    #allocation3 [shape = 's32[2]{0}', space=sflag, size = 0x8, scoped, tag = 'scoped memory for tpu_custom_call.1']
    %10 = vsyncpa [#allocation3], 0
    %s11 = scalar_lea.sflag [#allocation3], 1
    %12 = vsyncpa %s11, 0
    loop: start=0, step=1, limit=4
    $region2: #{tpu_custom_call.1} parent=1 // loop_pre_header
      _
    $region3: #{tpu_custom_call.1} parent=1 // loop_header
      %s14 = sphi 0, %s18
      %p15 = scmp.ge.s32.totalorder %s14, 4
      %s21 = sphi 0, %s33
      %s22 = sphi 0, %s29
      %s23 = sphi 0, %s21
      %s24 = sphi 0, %s22
      %s25 = sphi 0, %s23
      %s26 = sphi 0, %s24
      %s38 = sphi 0, %s40
      %s41 = sphi 0, %s38
      %s42 = sphi 0, %s41
      %s58 = sphi 0, %s42
      %s62 = sphi 0, %s62
      %s64 = sphi 0, %s62
      %s65 = sphi 0, %s64
      %s79 = sphi 0, %s65
      %s83 = sphi 0, %s83
      %s85 = sphi 0, %s83
      %s86 = sphi 0, %s85
      %s100 = sphi 0, %s86
      %s108 = sphi 0, %s110
      %s111 = sphi 0, %s108
      %s112 = sphi 0, %s111
      %s128 = sphi 0, %s112
      %s136 = sphi 0, %s138
      %s139 = sphi 0, %s136
      %s140 = sphi 0, %s139
      %s156 = sphi 0, %s140
    $region4: #{tpu_custom_call.1} parent=1 // loop_header_branch
      %17 = sbr.rel (%p15) target = $region8
    $region5: #{tpu_custom_call.1} parent=1 // loop_body
      %s19 = ssub.s32 %s14, 1
      %s20 = ssub.s32 %s14, 2
      %s27 = sadd.s32 1, %s22
      %p28 = scmp.ge.s32.totalorder %s27, 1
      %s29 = scalar_select %p28, 0, %s27
      %s30 = sadd.s32 1, %s21
      %s31 = scalar_select %p28, %s30, %s21
      %p32 = scmp.ge.s32.totalorder %s31, 2
      %s33 = scalar_select %p32, 0, %s31
      %s34 = ssub.s32 %s21, %s33
      %s35 = ssub.s32 %s22, %s29
      %s36 = sor.u32 %s34, %s35
      %p37 = scmp.eq.s32.totalorder %s36, 0
      %s39 = sadd.s32 %s38, 1
      %s40 = scalar_select %p37, %s38, %s39
      %p43 = pneg %p37
      %p44 = scmp.eq.s32.totalorder %s14, 1
      %p45 = por %p43, %p44
      %p46 = scmp.ne.s32.totalorder %s38, %s41
      %p47 = scmp.eq.s32.totalorder %s14, 0
      %p48 = por %p46, %p47
      %p49 = scmp.ne.s32.totalorder %s38, %s41
      %p50 = scmp.eq.s32.totalorder %s19, 1
      %p51 = por %p49, %p50
      %p52 = scmp.ne.s32.totalorder %s41, %s42
      %p53 = scmp.eq.s32.totalorder %s19, 0
      %p54 = por %p52, %p53
      %p55 = scmp.ne.s32.totalorder %s41, %s42
      %p56 = scmp.eq.s32.totalorder %s20, 1
      %p57 = por %p55, %p56
      %p59 = scmp.ne.s32.totalorder %s42, %s58
      %p60 = scmp.eq.s32.totalorder %s20, 0
      %p61 = por %p59, %p60
      %s63 = sadd.s32 %s62, 1
      %p66 = scmp.eq.s32.totalorder %s14, 1
      %p67 = scmp.ne.s32.totalorder %s62, %s64
      %p68 = scmp.eq.s32.totalorder %s14, 0
      %p69 = por %p67, %p68
      %p70 = scmp.ne.s32.totalorder %s62, %s64
      %p71 = scmp.eq.s32.totalorder %s19, 1
      %p72 = por %p70, %p71
      %p73 = scmp.ne.s32.totalorder %s64, %s65
      %p74 = scmp.eq.s32.totalorder %s19, 0
      %p75 = por %p73, %p74
      %p76 = scmp.ne.s32.totalorder %s64, %s65
      %p77 = scmp.eq.s32.totalorder %s20, 1
      %p78 = por %p76, %p77
      %p80 = scmp.ne.s32.totalorder %s65, %s79
      %p81 = scmp.eq.s32.totalorder %s20, 0
      %p82 = por %p80, %p81
      %s84 = sadd.s32 %s83, 1
      %p87 = scmp.eq.s32.totalorder %s14, 1
      %p88 = scmp.ne.s32.totalorder %s83, %s85
      %p89 = scmp.eq.s32.totalorder %s14, 0
      %p90 = por %p88, %p89
      %p91 = scmp.ne.s32.totalorder %s83, %s85
      %p92 = scmp.eq.s32.totalorder %s19, 1
      %p93 = por %p91, %p92
      %p94 = scmp.ne.s32.totalorder %s85, %s86
      %p95 = scmp.eq.s32.totalorder %s19, 0
      %p96 = por %p94, %p95
      %p97 = scmp.ne.s32.totalorder %s85, %s86
      %p98 = scmp.eq.s32.totalorder %s20, 1
      %p99 = por %p97, %p98
      %p101 = scmp.ne.s32.totalorder %s86, %s100
      %p102 = scmp.eq.s32.totalorder %s20, 0
      %p103 = por %p101, %p102
      %s104 = ssub.s32 %s21, %s33
      %s105 = ssub.s32 %s22, %s29
      %s106 = sor.u32 %s104, %s105
      %p107 = scmp.eq.s32.totalorder %s106, 0
      %s109 = sadd.s32 %s108, 1
      %s110 = scalar_select %p107, %s108, %s109
      %p113 = pneg %p107
      %p114 = scmp.eq.s32.totalorder %s14, 1
      %p115 = por %p113, %p114
      %p116 = scmp.ne.s32.totalorder %s108, %s111
      %p117 = scmp.eq.s32.totalorder %s14, 0
      %p118 = por %p116, %p117
      %p119 = scmp.ne.s32.totalorder %s108, %s111
      %p120 = scmp.eq.s32.totalorder %s19, 1
      %p121 = por %p119, %p120
      %p122 = scmp.ne.s32.totalorder %s111, %s112
      %p123 = scmp.eq.s32.totalorder %s19, 0
      %p124 = por %p122, %p123
      %p125 = scmp.ne.s32.totalorder %s111, %s112
      %p126 = scmp.eq.s32.totalorder %s20, 1
      %p127 = por %p125, %p126
      %p129 = scmp.ne.s32.totalorder %s112, %s128
      %p130 = scmp.eq.s32.totalorder %s20, 0
      %p131 = por %p129, %p130
      %s132 = ssub.s32 %s21, %s33
      %s133 = ssub.s32 %s22, %s29
      %s134 = sor.u32 %s132, %s133
      %p135 = scmp.eq.s32.totalorder %s134, 0
      %s137 = sadd.s32 %s136, 1
      %s138 = scalar_select %p135, %s136, %s137
      %p141 = pneg %p135
      %p142 = scmp.eq.s32.totalorder %s14, 1
      %p143 = por %p141, %p142
      %p144 = scmp.ne.s32.totalorder %s136, %s139
      %p145 = scmp.eq.s32.totalorder %s14, 0
      %p146 = por %p144, %p145
      %p147 = scmp.ne.s32.totalorder %s136, %s139
      %p148 = scmp.eq.s32.totalorder %s19, 1
      %p149 = por %p147, %p148
      %p150 = scmp.ne.s32.totalorder %s139, %s140
      %p151 = scmp.eq.s32.totalorder %s19, 0
      %p152 = por %p150, %p151
      %p153 = scmp.ne.s32.totalorder %s139, %s140
      %p154 = scmp.eq.s32.totalorder %s20, 1
      %p155 = por %p153, %p154
      %p157 = scmp.ne.s32.totalorder %s140, %s156
      %p158 = scmp.eq.s32.totalorder %s20, 0
      %p159 = por %p157, %p158
      %p160 = scmp.le.s32.totalorder 1, %s14
      %p161 = scmp.lt.s32.totalorder %s14, 3
      %p162 = pnand %p160, %p161
      %p163 = pneg %p162
      // Predicated region
      $region9: #{tpu_custom_call.1} parent=5 // pred_check
        _
      $region10: #{tpu_custom_call.1} parent=5 // pred_check_branch
        %165 = sbr.rel (%p162) target = $region12
      $region11: #{tpu_custom_call.1} parent=5 // pred_region
        %s166 = ssub.s32 %s14, 1
        // Predicated region
        $region13: #{tpu_custom_call.1} parent=11 // pred_check
          %p167 = pneg %p75
        $region14: #{tpu_custom_call.1} parent=11 // pred_check_branch
          %169 = sbr.rel (%p167) target = $region16
        $region15: #{tpu_custom_call.1} parent=11 // pred_region
          _
        $region16: #{tpu_custom_call.1} parent=11 // pred_fallthru
          _
        // Predicated region
        $region17: #{tpu_custom_call.1} parent=11 // pred_check
          %p170 = pneg %p96
        $region18: #{tpu_custom_call.1} parent=11 // pred_check_branch
          %172 = sbr.rel (%p170) target = $region20
        $region19: #{tpu_custom_call.1} parent=11 // pred_region
          _
        $region20: #{tpu_custom_call.1} parent=11 // pred_fallthru
          _
      $region12: #{tpu_custom_call.1} parent=5 // pred_fallthru
        _
      %p173 = scmp.lt.s32.totalorder %s14, 2
      // Predicated region
      $region21: #{tpu_custom_call.1} parent=5 // pred_check
        %p174 = pneg %p173
      $region22: #{tpu_custom_call.1} parent=5 // pred_check_branch
        %176 = sbr.rel (%p174) target = $region24
      $region23: #{tpu_custom_call.1} parent=5 // pred_region
        // Predicated region
        $region25: #{tpu_custom_call.1} parent=23 // pred_check
          %p177 = pneg %p48
        $region26: #{tpu_custom_call.1} parent=23 // pred_check_branch
          %179 = sbr.rel (%p177) target = $region28
        $region27: #{tpu_custom_call.1} parent=23 // pred_region
          %s180 = smul.u32 8, %s22
          %p181 = scmp.lt.s32.totalorder %s21, 1
          %s182 = scalar_select %p181, %s21, 1
          %p183 = scmp.lt.s32.totalorder %s180, 7
          %s184 = scalar_select %p183, %s180, 7
          %s185 = smul.addr %s182, 8
          %s186 = sadd.s32 %s184, %s185
          %s187 = smul.addr %s186, 8
          %s188 = scalar_lea.vmem %s0, %s187
          %s189 = smul.u32 8, %s22
        $region28: #{tpu_custom_call.1} parent=23 // pred_fallthru
          _
      $region24: #{tpu_custom_call.1} parent=5 // pred_fallthru
        _
      %p190 = scmp.le.s32.totalorder 1, %s14
      %p191 = scmp.lt.s32.totalorder %s14, 3
      %p192 = pnand %p190, %p191
      %p193 = pneg %p192
      // Predicated region
      $region29: #{tpu_custom_call.1} parent=5 // pred_check
        _
      $region30: #{tpu_custom_call.1} parent=5 // pred_check_branch
        %195 = sbr.rel (%p192) target = $region32
      $region31: #{tpu_custom_call.1} parent=5 // pred_region
        %s196 = ssub.s32 %s14, 1
        %s197 = smul.u32 8, %s24
        %p198 = scmp.lt.s32.totalorder %s23, 1
        %s199 = scalar_select %p198, %s23, 1
        %p200 = scmp.lt.s32.totalorder %s197, 7
        %s201 = scalar_select %p200, %s197, 7
        %s202 = smul.addr %s199, 8
        %s203 = sadd.s32 %s201, %s202
        %s204 = smul.addr %s203, 8
        %s205 = scalar_lea.vmem %s0, %s204
        %p206 = pneg %p54
        %p207 = pneg %p51
        %p208 = pneg %p75
        %p209 = pneg %p72
        %p210 = pneg %p96
        %p211 = pneg %p93
        %p212 = pneg %p124
        %p213 = pneg %p121
        %s214 = sand.u32 %s111, 1
        %s215 = scalar_lea.sflag [#allocation3], %s214
        %s216 = sand.u32 %s111, 1
        %s217 = scalar_lea.vmem [#allocation2], %s216
        %p218 = pneg %p152
        %p219 = pneg %p149
        %s220 = smul.u32 8, %s24
        %p221 = scmp.lt.s32.totalorder %s23, 1
        %s222 = scalar_select %p221, %s23, 1
        %p223 = scmp.lt.s32.totalorder %s220, 7
        %s224 = scalar_select %p223, %s220, 7
        %s225 = smul.addr %s222, 8
        %s226 = sadd.s32 %s224, %s225
        %s227 = smul.addr %s226, 8
        %s228 = scalar_lea.vmem %s4, %s227
        %s229 = smul.u32 8, %s24
        %p230 = scmp.lt.s32.totalorder %s23, 1
        %s231 = scalar_select %p230, %s23, 1
        %p232 = scmp.lt.s32.totalorder %s229, 7
        %s233 = scalar_select %p232, %s229, 7
        %s234 = smul.addr %s231, 8
        %s235 = sadd.s32 %s233, %s234
        %s236 = smul.addr %s235, 8
        %s237 = scalar_lea.vmem %s0, %s236
        %s238 = smul.u32 8, %s24
        %s239 = smul.u32 8, %s24
        %p240 = scmp.lt.s32.totalorder %s23, 1
        %s241 = scalar_select %p240, %s23, 1
        %p242 = scmp.lt.s32.totalorder %s239, 7
        %s243 = scalar_select %p242, %s239, 7
        %s244 = smul.addr %s241, 8
        %s245 = sadd.s32 %s243, %s244
        %s246 = smul.addr %s245, 8
        %s247 = scalar_lea.vmem %s4, %s246
        %s248 = smul.u32 8, %s24
        %v250 = vld [vmem:[%s237] sm:$0xff]
        %v251 = vld [vmem:[%s237 + $0x8] sm:$0xff]
        %v252 = vld [vmem:[%s237 + $0x10] sm:$0xff]
        %v253 = vld [vmem:[%s237 + $0x18] sm:$0xff]
        %v254 = vld [vmem:[%s237 + $0x20] sm:$0xff]
        %v255 = vld [vmem:[%s237 + $0x28] sm:$0xff]
        %v256 = vld [vmem:[%s237 + $0x30] sm:$0xff]
        %v257 = vld [vmem:[%s237 + $0x38] sm:$0xff]
        %v258 = vld [vmem:[%s1] sm:$0xff]
        %v259 = vld [vmem:[%s1 + $0x8] sm:$0xff]
        %v260 = vld [vmem:[%s1 + $0x10] sm:$0xff]
        %v261 = vld [vmem:[%s1 + $0x18] sm:$0xff]
        %v262 = vld [vmem:[%s2] sm:$0x1]
        %v263 = vld [vmem:[%s2 + $0x1] sm:$0x1]
        %v264 = vld [vmem:[%s2 + $0x2] sm:$0x1]
        %v265 = vpack.c.bf16 %v251, %v250
        %v266 = vpack.c.bf16 %v253, %v252
        %v267 = vpack.c.bf16 %v255, %v254
        %v268 = vpack.c.bf16 %v257, %v256
        %v269 = vpack.c.bf16 %v259, %v258
        %v270 = vpack.c.bf16 %v261, %v260
        %v271 = vlaneseq
        %v272 = vshrl.u32 %v271, 7
        %v273 = vsub.s32 0, %v272
        %v274 = vrot.slane %v262, %v273
        %vm275 = vcmask 261120
        %v277 = vsel %vm275, %v265, 0
        %v280 = vsel %vm275, %v266, 0
        %v283 = vsel %vm275, %v267, 0
        %v286 = vsel %vm275, %v268, 0
        %288 = vmatprep.subr.bf16.mxu0 0
        %289 = vmatpush1.bf16.msra.mxu0 %v269
        %290 = vmatprep.subr.bf16.mxu0 0
        %291 = vmatpush1.bf16.msra.mxu0 %v270
        %292 = vmatprep.subr.bf16.mxu0 0
        %293 = vmatpush1.bf16.msra.mxu0 0
        %294 = vmatprep.subr.bf16.mxu0 0
        %295 = vmatpush1.bf16.msra.mxu0 0
        %296 = vmatprep.subr.bf16.mxu0 0
        %297 = vmatpush1.bf16.msra.mxu0 0
        %298 = vmatprep.subr.bf16.mxu0 0
        %299 = vmatpush1.bf16.msra.mxu0 0
        %300 = vmatprep.subr.bf16.mxu0 0
        %301 = vmatpush1.bf16.msra.mxu0 0
        %302 = vmatprep.subr.bf16.mxu0 0
        %303 = vmatpush1.bf16.msra.mxu0 0
        %304 = vmatprep.subr.bf16.mxu0 0
        %305 = vmatpush1.bf16.msra.mxu0 0
        %306 = vmatprep.subr.bf16.mxu0 0
        %307 = vmatpush1.bf16.msra.mxu0 0
        %308 = vmatprep.subr.bf16.mxu0 0
        %309 = vmatpush1.bf16.msra.mxu0 0
        %310 = vmatprep.subr.bf16.mxu0 0
        %311 = vmatpush1.bf16.msra.mxu0 0
        %312 = vmatprep.subr.bf16.mxu0 0
        %313 = vmatpush1.bf16.msra.mxu0 0
        %314 = vmatprep.subr.bf16.mxu0 0
        %315 = vmatpush1.bf16.msra.mxu0 0
        %316 = vmatprep.subr.bf16.mxu0 0
        %317 = vmatpush1.bf16.msra.mxu0 0
        %318 = vmatprep.subr.bf16.mxu0 0
        %319 = vmatpush1.bf16.msra.mxu0 0
        %320 = vmatprep.mubr.bf16.mxu0 0
        %321 = vmatmul.mubr.bf16.gmra.mrb[0].mxu0 %v277
        %v322 = vpop.f32.mrb[0].mxu0
        %v323 = vadd.f32 %v274, %v322
        %v324 = vpop.f32.mrb[0].mxu0
        %v325 = vpop.f32.mrb[0].mxu0
        %v326 = vadd.f32 %v274, %v325
        %v327 = vpop.f32.mrb[0].mxu0
        %328 = vmatprep.mubr.bf16.mxu0 0
        %329 = vmatmul.mubr.bf16.gmra.mrb[0].mxu0 %v280
        %v330 = vpop.f32.mrb[0].mxu0
        %v331 = vadd.f32 %v274, %v330
        %v332 = vpop.f32.mrb[0].mxu0
        %v333 = vpop.f32.mrb[0].mxu0
        %v334 = vadd.f32 %v274, %v333
        %v335 = vpop.f32.mrb[0].mxu0
        %336 = vmatprep.mubr.bf16.mxu0 0
        %337 = vmatmul.mubr.bf16.gmra.mrb[0].mxu0 %v283
        %v338 = vpop.f32.mrb[0].mxu0
        %v339 = vadd.f32 %v274, %v338
        %v340 = vpop.f32.mrb[0].mxu0
        %v341 = vpop.f32.mrb[0].mxu0
        %v342 = vadd.f32 %v274, %v341
        %v343 = vpop.f32.mrb[0].mxu0
        %344 = vmatprep.mubr.bf16.mxu0 0
        %345 = vmatmul.mubr.bf16.gmra.mrb[0].mxu0 %v286
        %v346 = vpop.f32.mrb[0].mxu0
        %v347 = vadd.f32 %v274, %v346
        %v348 = vpop.f32.mrb[0].mxu0
        %v349 = vpop.f32.mrb[0].mxu0
        %v350 = vadd.f32 %v274, %v349
        %v351 = vpop.f32.mrb[0].mxu0
        %352 = vdwg.mxu0
        %v353 = vmul.f32 %v323, 0.5
        %v354 = vmul.f32 %v326, 0.5
        %v355 = vmul.f32 %v331, 0.5
        %v356 = vmul.f32 %v334, 0.5
        %v357 = vmul.f32 %v339, 0.5
        %v358 = vmul.f32 %v342, 0.5
        %v359 = vmul.f32 %v347, 0.5
        %v360 = vmul.f32 %v350, 0.5
        %v361 = vmul.f32 %v323, 0.044715
        %v362 = vmul.f32 %v326, 0.044715
        %v363 = vmul.f32 %v331, 0.044715
        %v364 = vmul.f32 %v334, 0.044715
        %v365 = vmul.f32 %v339, 0.044715
        %v366 = vmul.f32 %v342, 0.044715
        %v367 = vmul.f32 %v347, 0.044715
        %v368 = vmul.f32 %v350, 0.044715
        %v369 = vmul.f32 %v361, %v323
        %v370 = vmul.f32 %v362, %v326
        %v371 = vmul.f32 %v363, %v331
        %v372 = vmul.f32 %v364, %v334
        %v373 = vmul.f32 %v365, %v339
        %v374 = vmul.f32 %v366, %v342
        %v375 = vmul.f32 %v367, %v347
        %v376 = vmul.f32 %v368, %v350
        %v377 = vmul.f32 %v369, %v323
        %v378 = vmul.f32 %v370, %v326
        %v379 = vmul.f32 %v371, %v331
        %v380 = vmul.f32 %v372, %v334
        %v381 = vmul.f32 %v373, %v339
        %v382 = vmul.f32 %v374, %v342
        %v383 = vmul.f32 %v375, %v347
        %v384 = vmul.f32 %v376, %v350
        %v385 = vadd.f32 %v323, %v377
        %v386 = vadd.f32 %v326, %v378
        %v387 = vadd.f32 %v331, %v379
        %v388 = vadd.f32 %v334, %v380
        %v389 = vadd.f32 %v339, %v381
        %v390 = vadd.f32 %v342, %v382
        %v391 = vadd.f32 %v347, %v383
        %v392 = vadd.f32 %v350, %v384
        %v393 = vmul.f32 %v385, 0.7978846
        %v394 = vmul.f32 %v386, 0.7978846
        %v395 = vmul.f32 %v387, 0.7978846
        %v396 = vmul.f32 %v388, 0.7978846
        %v397 = vmul.f32 %v389, 0.7978846
        %v398 = vmul.f32 %v390, 0.7978846
        %v399 = vmul.f32 %v391, 0.7978846
        %v400 = vmul.f32 %v392, 0.7978846
        %v401 = vtanh.pop %v393
        %v402 = vtanh.pop %v394
        %v403 = vtanh.pop %v395
        %v404 = vtanh.pop %v396
        %v405 = vtanh.pop %v397
        %v406 = vtanh.pop %v398
        %v407 = vtanh.pop %v399
        %v408 = vtanh.pop %v400
        %v409 = vadd.f32 %v401, 1.0
        %v410 = vadd.f32 %v402, 1.0
        %v411 = vadd.f32 %v403, 1.0
        %v412 = vadd.f32 %v404, 1.0
        %v413 = vadd.f32 %v405, 1.0
        %v414 = vadd.f32 %v406, 1.0
        %v415 = vadd.f32 %v407, 1.0
        %v416 = vadd.f32 %v408, 1.0
        %v417 = vmul.f32 %v353, %v409
        %v418 = vmul.f32 %v354, %v410
        %v419 = vmul.f32 %v355, %v411
        %v420 = vmul.f32 %v356, %v412
        %v421 = vmul.f32 %v357, %v413
        %v422 = vmul.f32 %v358, %v414
        %v423 = vmul.f32 %v359, %v415
        %v424 = vmul.f32 %v360, %v416
        %v425 = vlaneseq
        %v426 = vshrl.u32 %v425, 7
        %v427 = vsub.s32 0, %v426
        %v428 = vrot.slane %v263, %v427
        %v429 = vmul.f32 %v417, %v428
        %v430 = vmul.f32 %v418, %v428
        %v431 = vmul.f32 %v419, %v428
        %v432 = vmul.f32 %v420, %v428
        %v433 = vmul.f32 %v421, %v428
        %v434 = vmul.f32 %v422, %v428
        %v435 = vmul.f32 %v423, %v428
        %v436 = vmul.f32 %v424, %v428
        %vm437 = vcmask 130048
        %v438 = vsel %vm437, %v429, 0.0
        %439 = vadd.xlane.f32.xlu0 %v438
        %v440 = vpop.xlane.xlu0 %439
        %v441 = vsel %vm437, %v430, 0.0
        %442 = vadd.xlane.f32.xlu0 %v441
        %v443 = vpop.xlane.xlu0 %442
        %v444 = vsel %vm437, %v431, 0.0
        %445 = vadd.xlane.f32.xlu0 %v444
        %v446 = vpop.xlane.xlu0 %445
        %v447 = vsel %vm437, %v432, 0.0
        %448 = vadd.xlane.f32.xlu0 %v447
        %v449 = vpop.xlane.xlu0 %448
        %v450 = vsel %vm437, %v433, 0.0
        %451 = vadd.xlane.f32.xlu0 %v450
        %v452 = vpop.xlane.xlu0 %451
        %v453 = vsel %vm437, %v434, 0.0
        %454 = vadd.xlane.f32.xlu0 %v453
        %v455 = vpop.xlane.xlu0 %454
        %v456 = vsel %vm437, %v435, 0.0
        %457 = vadd.xlane.f32.xlu0 %v456
        %v458 = vpop.xlane.xlu0 %457
        %v459 = vsel %vm437, %v436, 0.0
        %460 = vadd.xlane.f32.xlu0 %v459
        %v461 = vpop.xlane.xlu0 %460
        %v462 = vlaneseq
        %v463 = vshrl.u32 %v462, 7
        %v464 = vsub.s32 0, %v463
        %v465 = vrot.slane %v264, %v464
        %v466 = vadd.f32 %v440, %v465
        %v467 = vadd.f32 %v443, %v465
        %v468 = vadd.f32 %v446, %v465
        %v469 = vadd.f32 %v449, %v465
        %v470 = vadd.f32 %v452, %v465
        %v471 = vadd.f32 %v455, %v465
        %v472 = vadd.f32 %v458, %v465
        %v473 = vadd.f32 %v461, %v465
        %vm474 = vcmask 7168
        %475 = vst.msk [vmem:[%s247] sm:$0xff] %vm474, %v466
        %476 = vst.msk [vmem:[%s247 + $0x8] sm:$0xff] %vm474, %v467
        %477 = vst.msk [vmem:[%s247 + $0x10] sm:$0xff] %vm474, %v468
        %478 = vst.msk [vmem:[%s247 + $0x18] sm:$0xff] %vm474, %v469
        %479 = vst.msk [vmem:[%s247 + $0x20] sm:$0xff] %vm474, %v470
        %480 = vst.msk [vmem:[%s247 + $0x28] sm:$0xff] %vm474, %v471
        %481 = vst.msk [vmem:[%s247 + $0x30] sm:$0xff] %vm474, %v472
        %482 = vst.msk [vmem:[%s247 + $0x38] sm:$0xff] %vm474, %v473
        %483 = vxpose.xlu0.b32.start [1/16] %v466, 128
        %484 = vxpose.xlu0.b32.cont [2/16] %v467, 128
        %485 = vxpose.xlu0.b32.cont [3/16] %v468, 128
        %486 = vxpose.xlu0.b32.cont [4/16] %v469, 128
        %487 = vxpose.xlu0.b32.cont [5/16] %v470, 128
        %488 = vxpose.xlu0.b32.cont [6/16] %v471, 128
        %489 = vxpose.xlu0.b32.cont [7/16] %v472, 128
        %490 = vxpose.xlu0.b32.cont [8/16] %v473, 128
        %491 = vxpose.xlu0.b32.cont [9/16] 0.0, 128
        %492 = vxpose.xlu0.b32.cont [10/16] 0.0, 128
        %493 = vxpose.xlu0.b32.cont [11/16] 0.0, 128
        %494 = vxpose.xlu0.b32.cont [12/16] 0.0, 128
        %495 = vxpose.xlu0.b32.cont [13/16] 0.0, 128
        %496 = vxpose.xlu0.b32.cont [14/16] 0.0, 128
        %497 = vxpose.xlu0.b32.cont [15/16] 0.0, 128
        %498 = vxpose.xlu0.b32.end [16/16] 0.0, 128
        %v499 = vpop.trf.xlu0
        %v500 = vpop.trf.xlu0
        %v501 = vpop.trf.xlu0
        %v502 = vpop.trf.xlu0
        %v503 = vpop.trf.xlu0
        %v504 = vpop.trf.xlu0
        %v505 = vpop.trf.xlu0
        %v506 = vpop.trf.xlu0
        %v507 = vpop.trf.xlu0
        %v508 = vpop.trf.xlu0
        %v509 = vpop.trf.xlu0
        %v510 = vpop.trf.xlu0
        %v511 = vpop.trf.xlu0
        %v512 = vpop.trf.xlu0
        %v513 = vpop.trf.xlu0
        %v514 = vpop.trf.xlu0
        %vm515 = vcmask 516096
        %516 = vst.msk [vmem:[%s217] sm:$0x1] %vm515, %v499
        %s517 = sand.u32 %s111, 1
        %s518 = scalar_lea.sflag [#allocation3], %s517
        %s519 = sand.u32 %s111, 1
        %s520 = scalar_lea.vmem [#allocation2], %s519
        %s521 = smul.u32 8, %s24
        %p522 = scmp.lt.s32.totalorder %s23, 1
        %s523 = scalar_select %p522, %s23, 1
        %p524 = scmp.lt.s32.totalorder %s521, 7
        %s525 = scalar_select %p524, %s521, 7
        %s526 = smul.addr %s523, 8
        %s527 = sadd.s32 %s525, %s526
        %s528 = smul.addr %s527, 8
        %s529 = scalar_lea.vmem %s4, %s528
        // Predicated region
        $region33: #{tpu_custom_call.1} parent=31 // pred_check
          %p530 = pneg %p121
        $region34: #{tpu_custom_call.1} parent=31 // pred_check_branch
          %532 = sbr.rel (%p530) target = $region36
        $region35: #{tpu_custom_call.1} parent=31 // pred_region
          %s534 = ssub.s32 16, 16
          %535 = vsyncadd %s518, %s534
          %s536 = sadd.s32 %s24, %s23
          %s537 = smul.addr %s536, 16
          %s538 = scalar_lea.hbm %s3, %s537
          %s540 = sshll.u32 %s520, 4
          %s541 = int_to_ptr.vmem [resolvable:$true] %s540
          %543 = dma.vmem_to_hbm [thread:$0]  %s541, 16, %s538, %s518
        $region36: #{tpu_custom_call.1} parent=31 // pred_fallthru
          _
        // Predicated region
        $region37: #{tpu_custom_call.1} parent=31 // pred_check
          %p544 = pneg %p149
        $region38: #{tpu_custom_call.1} parent=31 // pred_check_branch
          %546 = sbr.rel (%p544) target = $region40
        $region39: #{tpu_custom_call.1} parent=31 // pred_region
          %s547 = smul.u32 8, %s24
        $region40: #{tpu_custom_call.1} parent=31 // pred_fallthru
          _
      $region32: #{tpu_custom_call.1} parent=5 // pred_fallthru
        _
      %p548 = scmp.le.s32.totalorder 2, %s14
      // Predicated region
      $region41: #{tpu_custom_call.1} parent=5 // pred_check
        %p549 = pneg %p548
      $region42: #{tpu_custom_call.1} parent=5 // pred_check_branch
        %551 = sbr.rel (%p549) target = $region44
      $region43: #{tpu_custom_call.1} parent=5 // pred_region
        %s552 = ssub.s32 %s14, 2
        // Predicated region
        $region45: #{tpu_custom_call.1} parent=43 // pred_check
          %p553 = pneg %p127
        $region46: #{tpu_custom_call.1} parent=43 // pred_check_branch
          %555 = sbr.rel (%p553) target = $region48
        $region47: #{tpu_custom_call.1} parent=43 // pred_region
          %s556 = sand.u32 %s112, 1
          %s557 = scalar_lea.sflag [#allocation3], %s556
          %s558 = sand.u32 %s112, 1
          %s559 = scalar_lea.vmem [#allocation2], %s558
          %560 = dma.done %s557, 16
        $region48: #{tpu_custom_call.1} parent=43 // pred_fallthru
          _
        // Predicated region
        $region49: #{tpu_custom_call.1} parent=43 // pred_check
          %p561 = pneg %p155
        $region50: #{tpu_custom_call.1} parent=43 // pred_check_branch
          %563 = sbr.rel (%p561) target = $region52
        $region51: #{tpu_custom_call.1} parent=43 // pred_region
          %s564 = smul.u32 8, %s26
          %p565 = scmp.lt.s32.totalorder %s25, 1
          %s566 = scalar_select %p565, %s25, 1
          %p567 = scmp.lt.s32.totalorder %s564, 7
          %s568 = scalar_select %p567, %s564, 7
          %s569 = smul.addr %s566, 8
          %s570 = sadd.s32 %s568, %s569
          %s571 = smul.addr %s570, 8
          %s572 = scalar_lea.vmem %s4, %s571
        $region52: #{tpu_custom_call.1} parent=43 // pred_fallthru
          _
      $region44: #{tpu_custom_call.1} parent=5 // pred_fallthru
        _
    $region6: #{tpu_custom_call.1} parent=1 // loop_footer
      %s18 = sadd.s32 1, %s14
    $region7: #{tpu_custom_call.1} parent=1 // loop_footer_branch
      %13 = sbr.rel target = $region3
    $region8: #{tpu_custom_call.1} parent=1 // loop_exit
      _
    %573 = vsyncpa [#allocation3], 1
    %s574 = scalar_lea.sflag [#allocation3], 1
    %575 = vsyncpa %s574, 1

</llo_original>
